<compile_context>
chip_gen: v7x
topology: tpu7x:2x2x1
jax: 0.10.0
libtpu: 0.0.40
codegen_flags: <defaults>
</compile_context>

<pallas_src>
import jax
import jax.numpy as jnp
from jax.experimental import pallas as pl
from jax.experimental.pallas import tpu as pltpu

CHANNELS = (32, 64, 160, 256)   # MiT-B0 channel config
STRIDES = (4, 2, 2, 2)          # per-stage downsampling

VMEM_LIMIT = 32 * 1024 * 1024   # consistent with the small tiles below (all gens)


def _row_tile_target():
    """Bigger row tiles on 128 MiB-VMEM parts (v5e/v6e), smaller on v7x."""
    try:
        info = pltpu.get_tpu_info()
        vmem = getattr(info, "vmem_capacity_bytes", 0)
        return 2048 if vmem >= (96 << 20) else 1024
    except Exception:
        return 1024


ROW_TILE_TARGET = _row_tile_target()


# ----------------------------- tiling helpers -----------------------------

def _row_tile(m, target):
    """Largest divisor of m that is a multiple of 8 and <= target (else m)."""
    if m <= target:
        return m
    t = target - (target % 8)
    while t >= 8:
        if m % t == 0:
            return t
        t -= 8
    return m


def _col_tile(d, target=2048):
    """Largest divisor of d that is a multiple of 128 and <= target (else d)."""
    if d <= target:
        return d
    t = target - (target % 128)
    while t >= 128:
        if d % t == 0:
            return t
        t -= 128
    return d


def _batch_tile(r, target=8):
    t = min(r, target)
    while r % t:
        t -= 1
    return t


def _cparams(n_axes):
    return pltpu.CompilerParams(
        dimension_semantics=("parallel",) * n_axes,
        vmem_limit_bytes=VMEM_LIMIT,
    )


# ------------------------------ Pallas kernels -----------------------------

def _mm_bias_kernel(x_ref, w_ref, b_ref, o_ref):
    acc = jnp.dot(x_ref[...], w_ref[...], preferred_element_type=jnp.float32)
    o_ref[...] = (acc + b_ref[...]).astype(o_ref.dtype)


def _mm_kernel(a_ref, b_ref, o_ref):
    o_ref[...] = jnp.dot(
        a_ref[...], b_ref[...], preferred_element_type=jnp.float32
    ).astype(o_ref.dtype)


def _bn_relu_pred_kernel(x_ref, scale_ref, shift_ref, w_ref, b_ref, o_ref):
    # BatchNorm(eval) + ReLU epilogue in f32, then 1x1 pred conv on the MXU
    # (bf16 operands, f32 accumulation), class dim padded to 128 lanes.
    seg = jnp.maximum(x_ref[...] * scale_ref[...] + shift_ref[...], 0.0)
    o_ref[...] = (
        jnp.dot(seg.astype(w_ref.dtype), w_ref[...],
                preferred_element_type=jnp.float32)
        + b_ref[...]
    ).astype(o_ref.dtype)


def _resize_w_acc_kernel(ww_ref, x_ref, acc_ref, o_ref):
    # out[r] = acc[r] + ww @ x[r]  for a small batch of rows (channels on lanes)
    ww = ww_ref[...]
    for r in range(x_ref.shape[0]):  # static, small (<=8), unrolled
        o_ref[r, :, :] = acc_ref[r, :, :] + jnp.dot(
            ww, x_ref[r, :, :], preferred_element_type=jnp.float32)


# ------------------------------ kernel wrappers ----------------------------

def matmul_bias(x, w, b, out_dtype=jnp.float32):
    """(M,K)@(K,N)+b, M tiled; bf16 MXU operands, f32 accumulation/epilogue."""
    M, K = x.shape
    _, N = w.shape
    tm = _row_tile(M, ROW_TILE_TARGET)
    return pl.pallas_call(
        _mm_bias_kernel,
        out_shape=jax.ShapeDtypeStruct((M, N), out_dtype),
        grid=(M // tm,),
        in_specs=[
            pl.BlockSpec((tm, K), lambda i: (i, 0)),
            pl.BlockSpec((K, N), lambda i: (0, 0)),
            pl.BlockSpec((1, N), lambda i: (0, 0)),
        ],
        out_specs=pl.BlockSpec((tm, N), lambda i: (i, 0)),
        compiler_params=_cparams(1),
    )(x.astype(jnp.bfloat16), w.astype(jnp.bfloat16),
      b.reshape(1, N).astype(jnp.float32))


def matmul_plain(x, w, out_dtype=jnp.float32):
    """(M,K)@(K,N), M tiled, f32 operands (small resize matrices, no bias)."""
    M, K = x.shape
    _, N = w.shape
    tm = _row_tile(M, ROW_TILE_TARGET)
    return pl.pallas_call(
        _mm_kernel,
        out_shape=jax.ShapeDtypeStruct((M, N), out_dtype),
        grid=(M // tm,),
        in_specs=[
            pl.BlockSpec((tm, K), lambda i: (i, 0)),
            pl.BlockSpec((K, N), lambda i: (0, 0)),
        ],
        out_specs=pl.BlockSpec((tm, N), lambda i: (i, 0)),
        compiler_params=_cparams(1),
    )(x.astype(jnp.float32), w.astype(jnp.float32))


def bn_relu_pred(x, scale, shift, w_pad, b_pad):
    """Fused BatchNorm(eval)+ReLU+Dropout(identity)+linear_pred, M tiled."""
    M, K = x.shape
    _, N = w_pad.shape
    tm = _row_tile(M, ROW_TILE_TARGET)
    return pl.pallas_call(
        _bn_relu_pred_kernel,
        out_shape=jax.ShapeDtypeStruct((M, N), jnp.float32),
        grid=(M // tm,),
        in_specs=[
            pl.BlockSpec((tm, K), lambda i: (i, 0)),
            pl.BlockSpec((1, K), lambda i: (0, 0)),
            pl.BlockSpec((1, K), lambda i: (0, 0)),
            pl.BlockSpec((K, N), lambda i: (0, 0)),
            pl.BlockSpec((1, N), lambda i: (0, 0)),
        ],
        out_specs=pl.BlockSpec((tm, N), lambda i: (i, 0)),
        compiler_params=_cparams(1),
    )(x.astype(jnp.float32),
      scale.reshape(1, K).astype(jnp.float32),
      shift.reshape(1, K).astype(jnp.float32),
      w_pad.astype(jnp.bfloat16),
      b_pad.reshape(1, N).astype(jnp.float32))


def resize_rows(wh, x):
    """out[g] = wh @ x[g]  — contraction over the leading spatial dim.

    wh: (h_out, h_in) f32;  x: (G, h_in, D) f32  ->  (G, h_out, D) f32.
    D is tiled in 128-lane multiples; G (batch / batch*class) on the grid.
    """
    G, h_in, D = x.shape
    h_out = wh.shape[0]
    td = _col_tile(D)
    return pl.pallas_call(
        _mm_kernel,
        out_shape=jax.ShapeDtypeStruct((G, h_out, D), jnp.float32),
        grid=(G, D // td),
        in_specs=[
            pl.BlockSpec((h_out, h_in), lambda g, d: (0, 0)),
            pl.BlockSpec((None, h_in, td), lambda g, d: (g, 0, d)),
        ],
        out_specs=pl.BlockSpec((None, h_out, td), lambda g, d: (g, 0, d)),
        compiler_params=_cparams(2),
    )(wh.astype(jnp.float32), x.astype(jnp.float32))


def resize_cols_accumulate(ww, x, acc):
    """out[r] = acc[r] + ww @ x[r]  — contraction over the width dim, channels
    stay on the 128-lane axis; fuses the per-scale accumulation (replacing the
    channel concat) into the W-resize pass.

    ww: (w_out, w_in);  x: (R, w_in, C);  acc: (R, w_out, C).
    """
    R, w_in, C = x.shape
    w_out = ww.shape[0]
    tr = _batch_tile(R, 8)
    return pl.pallas_call(
        _resize_w_acc_kernel,
        out_shape=jax.ShapeDtypeStruct((R, w_out, C), jnp.float32),
        grid=(R // tr,),
        in_specs=[
            pl.BlockSpec((w_out, w_in), lambda i: (0, 0)),
            pl.BlockSpec((tr, w_in, C), lambda i: (i, 0, 0)),
            pl.BlockSpec((tr, w_out, C), lambda i: (i, 0, 0)),
        ],
        out_specs=pl.BlockSpec((tr, w_out, C), lambda i: (i, 0, 0)),
        compiler_params=_cparams(1),
    )(ww.astype(jnp.float32), x.astype(jnp.float32), acc.astype(jnp.float32))


# ------------------------------- glue (JAX) --------------------------------

def patchify_nhwc(x, k):
    """Non-overlapping k×k patch extraction (conv stride=k im2col)."""
    B, H, W, C = x.shape
    x = x.reshape(B, H // k, k, W // k, k, C)
    x = x.transpose(0, 1, 3, 2, 4, 5)
    return x.reshape(B, H // k, W // k, k * k * C)


def resize_matrix(out_size, in_size):
    """1-D bilinear matrix, PyTorch align_corners=False rule (rows sum to 1)."""
    if out_size == in_size:
        return jnp.eye(out_size, dtype=jnp.float32)
    scale = in_size / out_size
    dst = jnp.arange(out_size, dtype=jnp.float32)
    src = jnp.maximum((dst + 0.5) * scale - 0.5, 0.0)
    x0 = jnp.minimum(jnp.floor(src).astype(jnp.int32), in_size - 1)
    x1 = jnp.minimum(x0 + 1, in_size - 1)
    w1 = src - x0.astype(jnp.float32)
    w0 = 1.0 - w1
    rows = jnp.arange(out_size)
    m = jnp.zeros((out_size, in_size), jnp.float32)
    m = m.at[rows, x0].add(w0)
    m = m.at[rows, x1].add(w1)
    return m


# ------------------------------ model forward ------------------------------

def encoder_forward(x_nhwc, enc_params):
    # TODO(synk): MiT attention / Mix-FFN blocks omitted (class not in reference);
    # patch-embed-only stand-in with MiT-B0 channels & strides.
    feats = []
    cur = x_nhwc.astype(jnp.bfloat16)
    for (w, b), k in zip(enc_params, STRIDES):
        p = patchify_nhwc(cur, k)
        B, h, wd, pc = p.shape
        y = matmul_bias(p.reshape(B * h * wd, pc), w, b, out_dtype=jnp.bfloat16)
        cur = y.reshape(B, h, wd, w.shape[1])
        feats.append(cur)
    return feats


def head_forward(feats, hp, out_hw):
    """SegFormerHead + final upsample (restructured, mathematically equivalent).

    * linear_fuse (1x1, no bias) folded into each per-scale MLP projection:
        Wc_i = proj_w_i @ fuse_w[(3-i)E:(4-i)E],  bc_i = proj_b_i @ fuse_w[...]
      (torch.cat(outs[::-1]) reverses the block order).  Exact because both
      are per-pixel linear maps and bilinear resize (rows sum to 1) commutes
      with them, so the concat + 1024->256 conv becomes a sum of per-scale
      contributions accumulated inside the W-resize kernel.
    * BN(eval)+ReLU+Dropout(identity)+linear_pred fused, class dim padded to
      128 lanes for unmasked stores, sliced at 1/4 resolution.
    * Final bilinear upsample is separable, runs per (batch, class) slab, and
      emits NCHW directly (no full-resolution transpose).
    """
    B, H4, W4, _ = feats[0].shape
    E = hp["fuse_w"].shape[1]
    nc = hp["pred_w"].shape[1]
    n_scales = len(feats)

    acc = None
    for i, f in enumerate(feats):
        blk = hp["fuse_w"][(n_scales - 1 - i) * E:(n_scales - i) * E, :]  # (E,E)
        wc = hp["proj_w"][i] @ blk                                         # (c_i,E)
        bc = hp["proj_b"][i] @ blk                                         # (E,)
        Bf, h, w, c = f.shape
        y = matmul_bias(f.reshape(Bf * h * w, c), wc, bc, out_dtype=jnp.float32)
        if i == 0:
            acc = y.reshape(B * H4, W4, E)            # already at 1/4 res
        else:
            rh = resize_matrix(H4, h)                 # (H4, h)
            rw = resize_matrix(W4, w)                 # (W4, w)
            yh = resize_rows(rh, y.reshape(B, h, w * E))          # (B,H4,w*E)
            acc = resize_cols_accumulate(rw, yh.reshape(B * H4, w, E), acc)

    eps = 1e-5
    scale = hp["bn_gamma"] / jnp.sqrt(hp["bn_var"] + eps)
    shift = hp["bn_beta"] - hp["bn_mean"] * scale
    npad = max(128, ((nc + 127) // 128) * 128)
    w_pad = jnp.zeros((E, npad), jnp.float32).at[:, :nc].set(hp["pred_w"])
    b_pad = jnp.zeros((npad,), jnp.float32).at[:nc].set(hp["pred_b"])
    logits = bn_relu_pred(acc.reshape(B * H4 * W4, E), scale, shift, w_pad, b_pad)

    # final upsample to input resolution, NCHW output
    H, W = out_hw
    lg = logits.reshape(B, H4, W4, npad)[..., :nc]     # small (1/4 res, nc ch)
    lg = jnp.transpose(lg, (0, 3, 1, 2))               # (B,nc,H4,W4), small
    rw = resize_matrix(W, W4)                          # (W, W4)
    rh = resize_matrix(H, H4)                          # (H, H4)
    xw = matmul_plain(lg.reshape(B * nc * H4, W4), rw.T)   # W pass -> (B*nc*H4, W)
    out = resize_rows(rh, xw.reshape(B * nc, H4, W))       # H pass -> (B*nc, H, W)
    return out.reshape(B, nc, H, W)


def segformer_forward(x_nchw, params):
    enc_p, head_p = params
    x = jnp.transpose(x_nchw, (0, 2, 3, 1)).astype(jnp.float32)  # NCHW -> NHWC
    feats = encoder_forward(x, enc_p)
    return head_forward(feats, head_p, (x_nchw.shape[2], x_nchw.shape[3]))


# -------------------------------- parameters -------------------------------

def init_params(key, in_ch=3, num_classes=6):
    ks = iter(jax.random.split(key, 64))

    def nrm(shape, s=0.02):
        return s * jax.random.normal(next(ks), shape, jnp.float32)

    enc = []
    cin = in_ch
    for cout, k in zip(CHANNELS, STRIDES):
        enc.append((nrm((cin * k * k, cout)), nrm((cout,))))
        cin = cout

    embed_dim = CHANNELS[-1]
    head = dict(
        proj_w=[nrm((c, embed_dim)) for c in CHANNELS],
        proj_b=[nrm((embed_dim,)) for _ in CHANNELS],
        fuse_w=nrm((embed_dim * 4, embed_dim)),
        bn_gamma=1.0 + nrm((embed_dim,), 0.1),
        bn_beta=nrm((embed_dim,), 0.1),
        bn_mean=nrm((embed_dim,), 0.1),
        bn_var=1.0 + jnp.abs(nrm((embed_dim,), 0.1)),
        pred_w=nrm((embed_dim, num_classes)),
        pred_b=nrm((num_classes,)),
    )
    return enc, head


if __name__ == "__main__":
    key = jax.random.PRNGKey(0)
    k_x, k_p = jax.random.split(key)

    B, Cin, H, W = 2, 3, 64, 64        # small but divisible by the 32x total stride
    num_classes = 6

    x = jax.random.normal(k_x, (B, Cin, H, W), jnp.float32)
    params = init_params(k_p, in_ch=Cin, num_classes=num_classes)

    out = segformer_forward(x, params)
    out = jax.block_until_ready(out)

    assert out.shape == (B, num_classes, H, W), out.shape
    assert out.dtype == jnp.float32
    assert bool(jnp.isfinite(out).all())
    print("KERNEL_OK")
</pallas_src>

<mosaic_0001>
module attributes {stable_mosaic.version = 11 : i64} {
  func.func @_mm_bias_kernel(%arg0: i32, %arg1: memref<512x48xbf16, #tpu.memory_space<vmem>>, %arg2: memref<48x32xbf16, #tpu.memory_space<vmem>>, %arg3: memref<1x32xf32, #tpu.memory_space<vmem>>, %arg4: memref<512x32xbf16, #tpu.memory_space<vmem>>) attributes {dimension_semantics = [#tpu.dimension_semantics<parallel>], iteration_bounds = array<i64: 1>, scalar_prefetch = 0 : i64, scratch_operands = 0 : i64, tpu.core_type = #tpu.core_type<tc>, window_params = [{transform_indices = @transform_0, window_bounds = array<i64: 512, 48>}, {pipeline_mode = #tpu.pipeline_mode<synchronous>, transform_indices = @transform_1, window_bounds = array<i64: 48, 32>}, {pipeline_mode = #tpu.pipeline_mode<synchronous>, transform_indices = @transform_2, window_bounds = array<i64: 1, 32>}, {transform_indices = @transform_3, window_bounds = array<i64: 512, 32>}]} {
    %c0 = arith.constant 0 : index
    %c0_0 = arith.constant 0 : index
    %0 = vector.load %arg1[%c0, %c0_0] : memref<512x48xbf16, #tpu.memory_space<vmem>>, vector<512x48xbf16>
    %c0_1 = arith.constant 0 : index
    %c0_2 = arith.constant 0 : index
    %1 = vector.load %arg2[%c0_1, %c0_2] : memref<48x32xbf16, #tpu.memory_space<vmem>>, vector<48x32xbf16>
    %cst = arith.constant dense<0.000000e+00> : vector<512x32xf32>
    %2 = tpu.matmul %0, %1, %cst {dimension_numbers = #tpu.dot_dimension_numbers<[1], [0], [0], [1], [0, 0, 1, 1], [], []>} : vector<512x48xbf16>, vector<48x32xbf16>, vector<512x32xf32> -> vector<512x32xf32>
    %c0_3 = arith.constant 0 : index
    %c0_4 = arith.constant 0 : index
    %3 = vector.load %arg3[%c0_3, %c0_4] : memref<1x32xf32, #tpu.memory_space<vmem>>, vector<1x32xf32>
    %4 = vector.broadcast %3 : vector<1x32xf32> to vector<512x32xf32>
    %5 = arith.addf %2, %4 : vector<512x32xf32>
    %6 = arith.truncf %5 : vector<512x32xf32> to vector<512x32xbf16>
    %c0_5 = arith.constant 0 : index
    %c0_6 = arith.constant 0 : index
    %7 = vector.load %arg4[%c0_5, %c0_6] : memref<512x32xbf16, #tpu.memory_space<vmem>>, vector<512x32xbf16>
    tpu.vector_store %arg4[%c0_5, %c0_6], %6 {strides = array<i32>} : memref<512x32xbf16, #tpu.memory_space<vmem>>, vector<512x32xbf16>,
    return
  }
  func.func @transform_0(%arg0: i32) -> (i32, i32) {
    %c0_i32 = arith.constant 0 : i32
    %c0_i32_0 = arith.constant 0 : i32
    return %arg0, %c0_i32 : i32, i32
  }
  func.func @transform_1(%arg0: i32) -> (i32, i32) {
    %c0_i32 = arith.constant 0 : i32
    %c0_i32_0 = arith.constant 0 : i32
    %c0_i32_1 = arith.constant 0 : i32
    return %c0_i32, %c0_i32_0 : i32, i32
  }
  func.func @transform_2(%arg0: i32) -> (i32, i32) {
    %c0_i32 = arith.constant 0 : i32
    %c0_i32_0 = arith.constant 0 : i32
    %c0_i32_1 = arith.constant 0 : i32
    return %c0_i32, %c0_i32_0 : i32, i32
  }
  func.func @transform_3(%arg0: i32) -> (i32, i32) {
    %c0_i32 = arith.constant 0 : i32
    %c0_i32_0 = arith.constant 0 : i32
    return %arg0, %c0_i32 : i32, i32
  }
}

</mosaic_0001>

<llo_original>
// kernel: tpu_custom_call.1
$region0: #{tpu_custom_call.1}
  #allocation0 [shape = 'u32[]', space=smem, size = 0x4, offset = 0x4, fixed_abs, tag = 'smem constant byte address 0x4 - core index']
  #allocation1 [shape = 'u32[144,128]{1,0:T(1,128)}', space=vmem, size = 0x12000, scoped, tag = 'internal scratch']
  %s0 = inlined_call_operand.vmem [shape: bf16[512,48], index: 0, kind: input, shape index: {}]
  %s1 = inlined_call_operand.vmem [shape: bf16[48,32], index: 1, kind: input, shape index: {}]
  %s2 = inlined_call_operand.vmem [shape: f32[1,32], index: 2, kind: input, shape index: {}]
  %s3 = inlined_call_operand.vmem [shape: bf16[512,32], index: 3, kind: output, shape index: {}]
  %s4 = sld [smem:[#allocation0]]
  $region22: #{tpu_custom_call.1} parent=0
    _
  %s6 = ssub.s32 1, %s4
  %s7 = scalar_select 0, %s6, %s4
  // Predicated region
  $region2: #{tpu_custom_call.1} parent=0 // pred_check
    _
  $region3: #{tpu_custom_call.1} parent=0 // pred_check_branch
    %9 = sbr.rel (0) target = $region5
  $region4: #{tpu_custom_call.1} parent=0 // pred_region
    _
  $region5: #{tpu_custom_call.1} parent=0 // pred_fallthru
    _
  // Predicated region
  $region6: #{tpu_custom_call.1} parent=0 // pred_check
    _
  $region7: #{tpu_custom_call.1} parent=0 // pred_check_branch
    %11 = sbr.rel (0) target = $region9
  $region8: #{tpu_custom_call.1} parent=0 // pred_region
    _
  $region9: #{tpu_custom_call.1} parent=0 // pred_fallthru
    _
  // Predicated region
  $region10: #{tpu_custom_call.1} parent=0 // pred_check
    _
  $region11: #{tpu_custom_call.1} parent=0 // pred_check_branch
    %13 = sbr.rel (0) target = $region13
  $region12: #{tpu_custom_call.1} parent=0 // pred_region
    _
  $region13: #{tpu_custom_call.1} parent=0 // pred_fallthru
    _
  %v15 = vld [vmem:[%s0] sm:$0xf]
  %v16 = vld [vmem:[%s0 + $0x4] sm:$0xf]
  %v17 = vld [vmem:[%s0 + $0x8] sm:$0xf]
  %v18 = vld [vmem:[%s0 + $0xc] sm:$0xf]
  %v19 = vld [vmem:[%s0 + $0x10] sm:$0xf]
  %v20 = vld [vmem:[%s0 + $0x14] sm:$0xf]
  %v21 = vld [vmem:[%s0 + $0x18] sm:$0xf]
  %v22 = vld [vmem:[%s0 + $0x1c] sm:$0xf]
  %v23 = vld [vmem:[%s0 + $0x20] sm:$0xf]
  %v24 = vld [vmem:[%s0 + $0x24] sm:$0xf]
  %v25 = vld [vmem:[%s0 + $0x28] sm:$0xf]
  %v26 = vld [vmem:[%s0 + $0x2c] sm:$0xf]
  %v27 = vld [vmem:[%s0 + $0x30] sm:$0xf]
  %v28 = vld [vmem:[%s0 + $0x34] sm:$0xf]
  %v29 = vld [vmem:[%s0 + $0x38] sm:$0xf]
  %v30 = vld [vmem:[%s0 + $0x3c] sm:$0xf]
  %v31 = vld [vmem:[%s0 + $0x40] sm:$0xf]
  %v32 = vld [vmem:[%s0 + $0x44] sm:$0xf]
  %v33 = vld [vmem:[%s0 + $0x48] sm:$0xf]
  %v34 = vld [vmem:[%s0 + $0x4c] sm:$0xf]
  %v35 = vld [vmem:[%s0 + $0x50] sm:$0xf]
  %v36 = vld [vmem:[%s0 + $0x54] sm:$0xf]
  %v37 = vld [vmem:[%s0 + $0x58] sm:$0xf]
  %v38 = vld [vmem:[%s0 + $0x5c] sm:$0xf]
  %v39 = vld [vmem:[%s0 + $0x60] sm:$0xf]
  %v40 = vld [vmem:[%s0 + $0x64] sm:$0xf]
  %v41 = vld [vmem:[%s0 + $0x68] sm:$0xf]
  %v42 = vld [vmem:[%s0 + $0x6c] sm:$0xf]
  %v43 = vld [vmem:[%s0 + $0x70] sm:$0xf]
  %v44 = vld [vmem:[%s0 + $0x74] sm:$0xf]
  %v45 = vld [vmem:[%s0 + $0x78] sm:$0xf]
  %v46 = vld [vmem:[%s0 + $0x7c] sm:$0xf]
  %v47 = vld [vmem:[%s0 + $0x80] sm:$0xf]
  %v48 = vld [vmem:[%s0 + $0x84] sm:$0xf]
  %v49 = vld [vmem:[%s0 + $0x88] sm:$0xf]
  %v50 = vld [vmem:[%s0 + $0x8c] sm:$0xf]
  %v51 = vld [vmem:[%s0 + $0x90] sm:$0xf]
  %v52 = vld [vmem:[%s0 + $0x94] sm:$0xf]
  %v53 = vld [vmem:[%s0 + $0x98] sm:$0xf]
  %v54 = vld [vmem:[%s0 + $0x9c] sm:$0xf]
  %v55 = vld [vmem:[%s0 + $0xa0] sm:$0xf]
  %v56 = vld [vmem:[%s0 + $0xa4] sm:$0xf]
  %v57 = vld [vmem:[%s0 + $0xa8] sm:$0xf]
  %v58 = vld [vmem:[%s0 + $0xac] sm:$0xf]
  %v59 = vld [vmem:[%s0 + $0xb0] sm:$0xf]
  %v60 = vld [vmem:[%s0 + $0xb4] sm:$0xf]
  %v61 = vld [vmem:[%s0 + $0xb8] sm:$0xf]
  %v62 = vld [vmem:[%s0 + $0xbc] sm:$0xf]
  %v63 = vld [vmem:[%s0 + $0xc0] sm:$0xf]
  %v64 = vld [vmem:[%s0 + $0xc4] sm:$0xf]
  %v65 = vld [vmem:[%s0 + $0xc8] sm:$0xf]
  %v66 = vld [vmem:[%s0 + $0xcc] sm:$0xf]
  %v67 = vld [vmem:[%s0 + $0xd0] sm:$0xf]
  %v68 = vld [vmem:[%s0 + $0xd4] sm:$0xf]
  %v69 = vld [vmem:[%s0 + $0xd8] sm:$0xf]
  %v70 = vld [vmem:[%s0 + $0xdc] sm:$0xf]
  %v71 = vld [vmem:[%s0 + $0xe0] sm:$0xf]
  %v72 = vld [vmem:[%s0 + $0xe4] sm:$0xf]
  %v73 = vld [vmem:[%s0 + $0xe8] sm:$0xf]
  %v74 = vld [vmem:[%s0 + $0xec] sm:$0xf]
  %v75 = vld [vmem:[%s0 + $0xf0] sm:$0xf]
  %v76 = vld [vmem:[%s0 + $0xf4] sm:$0xf]
  %v77 = vld [vmem:[%s0 + $0xf8] sm:$0xf]
  %v78 = vld [vmem:[%s0 + $0xfc] sm:$0xf]
  %v79 = vld [vmem:[%s1] sm:$0xf]
  %v80 = vld [vmem:[%s1 + $0x4] sm:$0xf]
  %v81 = vld [vmem:[%s1 + $0x8] sm:$0xf]
  %v82 = vld [vmem:[%s1 + $0xc] sm:$0xf]
  %v83 = vld [vmem:[%s1 + $0x10] sm:$0xf]
  %v84 = vld [vmem:[%s1 + $0x14] sm:$0xf]
  %v85 = vld [vmem:[%s2] sm:$0x1]
  %v87 = vlaneseq
  %v88 = vshrl.u32 %v87, 7
  %v89 = vsub.s32 0, %v88
  %v90 = vrot.slane %v85, %v89
  %v156 = vunpack.c.l.b16 %v15
  %v157 = vunpack.c.l.b16 %v16
  %v158 = vunpack.c.l.b16 %v17
  %v159 = vunpack.c.l.b16 %v18
  %v160 = vunpack.c.l.b16 %v19
  %v161 = vunpack.c.l.b16 %v20
  %v162 = vunpack.c.l.b16 %v21
  %v163 = vunpack.c.l.b16 %v22
  %v164 = vunpack.c.l.b16 %v23
  %v165 = vunpack.c.l.b16 %v24
  %v166 = vunpack.c.l.b16 %v25
  %v167 = vunpack.c.l.b16 %v26
  %v168 = vunpack.c.l.b16 %v27
  %v169 = vunpack.c.l.b16 %v28
  %v170 = vunpack.c.l.b16 %v29
  %v171 = vunpack.c.l.b16 %v30
  %v172 = vunpack.c.l.b16 %v31
  %v173 = vunpack.c.l.b16 %v32
  %v174 = vunpack.c.l.b16 %v33
  %v175 = vunpack.c.l.b16 %v34
  %v176 = vunpack.c.l.b16 %v35
  %v177 = vunpack.c.l.b16 %v36
  %v178 = vunpack.c.l.b16 %v37
  %v179 = vunpack.c.l.b16 %v38
  %v180 = vunpack.c.l.b16 %v39
  %v181 = vunpack.c.l.b16 %v40
  %v182 = vunpack.c.l.b16 %v41
  %v183 = vunpack.c.l.b16 %v42
  %v184 = vunpack.c.l.b16 %v43
  %v185 = vunpack.c.l.b16 %v44
  %v186 = vunpack.c.l.b16 %v45
  %v187 = vunpack.c.l.b16 %v46
  %v188 = vunpack.c.l.b16 %v47
  %v189 = vunpack.c.l.b16 %v48
  %v190 = vunpack.c.l.b16 %v49
  %v191 = vunpack.c.l.b16 %v50
  %v192 = vunpack.c.l.b16 %v51
  %v193 = vunpack.c.l.b16 %v52
  %v194 = vunpack.c.l.b16 %v53
  %v195 = vunpack.c.l.b16 %v54
  %v196 = vunpack.c.l.b16 %v55
  %v197 = vunpack.c.l.b16 %v56
  %v198 = vunpack.c.l.b16 %v57
  %v199 = vunpack.c.l.b16 %v58
  %v200 = vunpack.c.l.b16 %v59
  %v201 = vunpack.c.l.b16 %v60
  %v202 = vunpack.c.l.b16 %v61
  %v203 = vunpack.c.l.b16 %v62
  %v204 = vunpack.c.l.b16 %v63
  %v205 = vunpack.c.l.b16 %v64
  %v206 = vunpack.c.l.b16 %v65
  %v207 = vunpack.c.l.b16 %v66
  %v208 = vunpack.c.l.b16 %v67
  %v209 = vunpack.c.l.b16 %v68
  %v210 = vunpack.c.l.b16 %v69
  %v211 = vunpack.c.l.b16 %v70
  %v212 = vunpack.c.l.b16 %v71
  %v213 = vunpack.c.l.b16 %v72
  %v214 = vunpack.c.l.b16 %v73
  %v215 = vunpack.c.l.b16 %v74
  %v216 = vunpack.c.l.b16 %v75
  %v217 = vunpack.c.l.b16 %v76
  %v218 = vunpack.c.l.b16 %v77
  %v219 = vunpack.c.l.b16 %v78
  %v220 = vpack.c.b16 %v157, %v156
  %v221 = vpack.c.b16 %v159, %v158
  %v222 = vpack.c.b16 %v161, %v160
  %v223 = vpack.c.b16 %v163, %v162
  %v224 = vpack.c.b16 %v165, %v164
  %v225 = vpack.c.b16 %v167, %v166
  %v226 = vpack.c.b16 %v169, %v168
  %v227 = vpack.c.b16 %v171, %v170
  %v228 = vpack.c.b16 %v173, %v172
  %v229 = vpack.c.b16 %v175, %v174
  %v230 = vpack.c.b16 %v177, %v176
  %v231 = vpack.c.b16 %v179, %v178
  %v232 = vpack.c.b16 %v181, %v180
  %v233 = vpack.c.b16 %v183, %v182
  %v234 = vpack.c.b16 %v185, %v184
  %v235 = vpack.c.b16 %v187, %v186
  %v236 = vpack.c.b16 %v189, %v188
  %v237 = vpack.c.b16 %v191, %v190
  %v238 = vpack.c.b16 %v193, %v192
  %v239 = vpack.c.b16 %v195, %v194
  %v240 = vpack.c.b16 %v197, %v196
  %v241 = vpack.c.b16 %v199, %v198
  %v242 = vpack.c.b16 %v201, %v200
  %v243 = vpack.c.b16 %v203, %v202
  %v244 = vpack.c.b16 %v205, %v204
  %v245 = vpack.c.b16 %v207, %v206
  %v246 = vpack.c.b16 %v209, %v208
  %v247 = vpack.c.b16 %v211, %v210
  %v248 = vpack.c.b16 %v213, %v212
  %v249 = vpack.c.b16 %v215, %v214
  %v250 = vpack.c.b16 %v217, %v216
  %v251 = vpack.c.b16 %v219, %v218
  %v258 = vunpack.c.l.b16 %v79
  %v259 = vunpack.c.l.b16 %v80
  %v260 = vunpack.c.l.b16 %v81
  %v261 = vunpack.c.l.b16 %v82
  %v262 = vunpack.c.l.b16 %v83
  %v263 = vunpack.c.l.b16 %v84
  %v264 = vpack.c.b16 %v259, %v258
  %v265 = vpack.c.b16 %v261, %v260
  %v266 = vpack.c.b16 %v263, %v262
  %vm270 = vcmask 392192
  %v272 = vsel %vm270, %v220, 0
  %v275 = vsel %vm270, %v221, 0
  %v278 = vsel %vm270, %v222, 0
  %v281 = vsel %vm270, %v223, 0
  %v284 = vsel %vm270, %v224, 0
  %v287 = vsel %vm270, %v225, 0
  %v290 = vsel %vm270, %v226, 0
  %v293 = vsel %vm270, %v227, 0
  %v296 = vsel %vm270, %v228, 0
  %v299 = vsel %vm270, %v229, 0
  %v302 = vsel %vm270, %v230, 0
  %v305 = vsel %vm270, %v231, 0
  %v308 = vsel %vm270, %v232, 0
  %v311 = vsel %vm270, %v233, 0
  %v314 = vsel %vm270, %v234, 0
  %v317 = vsel %vm270, %v235, 0
  %v320 = vsel %vm270, %v236, 0
  %v323 = vsel %vm270, %v237, 0
  %v326 = vsel %vm270, %v238, 0
  %v329 = vsel %vm270, %v239, 0
  %v332 = vsel %vm270, %v240, 0
  %v335 = vsel %vm270, %v241, 0
  %v338 = vsel %vm270, %v242, 0
  %v341 = vsel %vm270, %v243, 0
  %v344 = vsel %vm270, %v244, 0
  %v347 = vsel %vm270, %v245, 0
  %v350 = vsel %vm270, %v246, 0
  %v353 = vsel %vm270, %v247, 0
  %v356 = vsel %vm270, %v248, 0
  %v359 = vsel %vm270, %v249, 0
  %v362 = vsel %vm270, %v250, 0
  %v365 = vsel %vm270, %v251, 0
  %367 = vmatprep.subr.bf16.mxu0 0
  %368 = vmatpush1.bf16.msra.mxu0 %v264
  %369 = vmatprep.subr.bf16.mxu0 0
  %370 = vmatpush1.bf16.msra.mxu0 %v265
  %371 = vmatprep.subr.bf16.mxu0 0
  %372 = vmatpush1.bf16.msra.mxu0 %v266
  %373 = vmatprep.subr.bf16.mxu0 0
  %374 = vmatpush1.bf16.msra.mxu0 0
  %375 = vmatprep.subr.bf16.mxu0 0
  %376 = vmatpush1.bf16.msra.mxu0 0
  %377 = vmatprep.subr.bf16.mxu0 0
  %378 = vmatpush1.bf16.msra.mxu0 0
  %379 = vmatprep.subr.bf16.mxu0 0
  %380 = vmatpush1.bf16.msra.mxu0 0
  %381 = vmatprep.subr.bf16.mxu0 0
  %382 = vmatpush1.bf16.msra.mxu0 0
  %383 = vmatprep.subr.bf16.mxu0 0
  %384 = vmatpush1.bf16.msra.mxu0 0
  %385 = vmatprep.subr.bf16.mxu0 0
  %386 = vmatpush1.bf16.msra.mxu0 0
  %387 = vmatprep.subr.bf16.mxu0 0
  %388 = vmatpush1.bf16.msra.mxu0 0
  %389 = vmatprep.subr.bf16.mxu0 0
  %390 = vmatpush1.bf16.msra.mxu0 0
  %391 = vmatprep.subr.bf16.mxu0 0
  %392 = vmatpush1.bf16.msra.mxu0 0
  %393 = vmatprep.subr.bf16.mxu0 0
  %394 = vmatpush1.bf16.msra.mxu0 0
  %395 = vmatprep.subr.bf16.mxu0 0
  %396 = vmatpush1.bf16.msra.mxu0 0
  %397 = vmatprep.subr.bf16.mxu0 0
  %398 = vmatpush1.bf16.msra.mxu0 0
  %399 = vmatprep.mubr.bf16.mxu0 0
  %400 = vmatmul.mubr.bf16.gmra.mrb[0].mxu0 %v272
  %v401 = vpop.f32.mrb[0].mxu0
  %v402 = vadd.f32 %v90, %v401
  %v403 = vpop.f32.mrb[0].mxu0
  %v404 = vpop.f32.mrb[0].mxu0
  %v405 = vadd.f32 %v90, %v404
  %v406 = vpop.f32.mrb[0].mxu0
  %407 = vmatprep.mubr.bf16.mxu0 0
  %408 = vmatmul.mubr.bf16.gmra.mrb[0].mxu0 %v275
  %v409 = vpop.f32.mrb[0].mxu0
  %v410 = vadd.f32 %v90, %v409
  %v411 = vpop.f32.mrb[0].mxu0
  %v412 = vpop.f32.mrb[0].mxu0
  %v413 = vadd.f32 %v90, %v412
  %v414 = vpop.f32.mrb[0].mxu0
  %415 = vmatprep.mubr.bf16.mxu0 0
  %416 = vmatmul.mubr.bf16.gmra.mrb[0].mxu0 %v278
  %v417 = vpop.f32.mrb[0].mxu0
  %v418 = vadd.f32 %v90, %v417
  %v419 = vpop.f32.mrb[0].mxu0
  %v420 = vpop.f32.mrb[0].mxu0
  %v421 = vadd.f32 %v90, %v420
  %v422 = vpop.f32.mrb[0].mxu0
  %423 = vmatprep.mubr.bf16.mxu0 0
  %424 = vmatmul.mubr.bf16.gmra.mrb[0].mxu0 %v281
  %v425 = vpop.f32.mrb[0].mxu0
  %v426 = vadd.f32 %v90, %v425
  %v427 = vpop.f32.mrb[0].mxu0
  %v428 = vpop.f32.mrb[0].mxu0
  %v429 = vadd.f32 %v90, %v428
  %v430 = vpop.f32.mrb[0].mxu0
  %431 = vmatprep.mubr.bf16.mxu0 0
  %432 = vmatmul.mubr.bf16.gmra.mrb[0].mxu0 %v284
  %v433 = vpop.f32.mrb[0].mxu0
  %v434 = vadd.f32 %v90, %v433
  %v435 = vpop.f32.mrb[0].mxu0
  %v436 = vpop.f32.mrb[0].mxu0
  %v437 = vadd.f32 %v90, %v436
  %v438 = vpop.f32.mrb[0].mxu0
  %439 = vmatprep.mubr.bf16.mxu0 0
  %440 = vmatmul.mubr.bf16.gmra.mrb[0].mxu0 %v287
  %v441 = vpop.f32.mrb[0].mxu0
  %v442 = vadd.f32 %v90, %v441
  %v443 = vpop.f32.mrb[0].mxu0
  %v444 = vpop.f32.mrb[0].mxu0
  %v445 = vadd.f32 %v90, %v444
  %v446 = vpop.f32.mrb[0].mxu0
  %447 = vmatprep.mubr.bf16.mxu0 0
  %448 = vmatmul.mubr.bf16.gmra.mrb[0].mxu0 %v290
  %v449 = vpop.f32.mrb[0].mxu0
  %v450 = vadd.f32 %v90, %v449
  %v451 = vpop.f32.mrb[0].mxu0
  %v452 = vpop.f32.mrb[0].mxu0
  %v453 = vadd.f32 %v90, %v452
  %v454 = vpop.f32.mrb[0].mxu0
  %455 = vmatprep.mubr.bf16.mxu0 0
  %456 = vmatmul.mubr.bf16.gmra.mrb[0].mxu0 %v293
  %v457 = vpop.f32.mrb[0].mxu0
  %v458 = vadd.f32 %v90, %v457
  %v459 = vpop.f32.mrb[0].mxu0
  %v460 = vpop.f32.mrb[0].mxu0
  %v461 = vadd.f32 %v90, %v460
  %v462 = vpop.f32.mrb[0].mxu0
  %463 = vmatprep.mubr.bf16.mxu0 0
  %464 = vmatmul.mubr.bf16.gmra.mrb[0].mxu0 %v296
  %v465 = vpop.f32.mrb[0].mxu0
  %v466 = vadd.f32 %v90, %v465
  %v467 = vpop.f32.mrb[0].mxu0
  %v468 = vpop.f32.mrb[0].mxu0
  %v469 = vadd.f32 %v90, %v468
  %v470 = vpop.f32.mrb[0].mxu0
  %471 = vmatprep.mubr.bf16.mxu0 0
  %472 = vmatmul.mubr.bf16.gmra.mrb[0].mxu0 %v299
  %v473 = vpop.f32.mrb[0].mxu0
  %v474 = vadd.f32 %v90, %v473
  %v475 = vpop.f32.mrb[0].mxu0
  %v476 = vpop.f32.mrb[0].mxu0
  %v477 = vadd.f32 %v90, %v476
  %v478 = vpop.f32.mrb[0].mxu0
  %479 = vmatprep.mubr.bf16.mxu0 0
  %480 = vmatmul.mubr.bf16.gmra.mrb[0].mxu0 %v302
  %v481 = vpop.f32.mrb[0].mxu0
  %v482 = vadd.f32 %v90, %v481
  %v483 = vpop.f32.mrb[0].mxu0
  %v484 = vpop.f32.mrb[0].mxu0
  %v485 = vadd.f32 %v90, %v484
  %v486 = vpop.f32.mrb[0].mxu0
  %487 = vmatprep.mubr.bf16.mxu0 0
  %488 = vmatmul.mubr.bf16.gmra.mrb[0].mxu0 %v305
  %v489 = vpop.f32.mrb[0].mxu0
  %v490 = vadd.f32 %v90, %v489
  %v491 = vpop.f32.mrb[0].mxu0
  %v492 = vpop.f32.mrb[0].mxu0
  %v493 = vadd.f32 %v90, %v492
  %v494 = vpop.f32.mrb[0].mxu0
  %495 = vmatprep.mubr.bf16.mxu0 0
  %496 = vmatmul.mubr.bf16.gmra.mrb[0].mxu0 %v308
  %v497 = vpop.f32.mrb[0].mxu0
  %v498 = vadd.f32 %v90, %v497
  %v499 = vpop.f32.mrb[0].mxu0
  %v500 = vpop.f32.mrb[0].mxu0
  %v501 = vadd.f32 %v90, %v500
  %v502 = vpop.f32.mrb[0].mxu0
  %503 = vmatprep.mubr.bf16.mxu0 0
  %504 = vmatmul.mubr.bf16.gmra.mrb[0].mxu0 %v311
  %v505 = vpop.f32.mrb[0].mxu0
  %v506 = vadd.f32 %v90, %v505
  %v507 = vpop.f32.mrb[0].mxu0
  %v508 = vpop.f32.mrb[0].mxu0
  %v509 = vadd.f32 %v90, %v508
  %v510 = vpop.f32.mrb[0].mxu0
  %511 = vmatprep.mubr.bf16.mxu0 0
  %512 = vmatmul.mubr.bf16.gmra.mrb[0].mxu0 %v314
  %v513 = vpop.f32.mrb[0].mxu0
  %v514 = vadd.f32 %v90, %v513
  %v515 = vpop.f32.mrb[0].mxu0
  %v516 = vpop.f32.mrb[0].mxu0
  %v517 = vadd.f32 %v90, %v516
  %v518 = vpop.f32.mrb[0].mxu0
  %519 = vmatprep.mubr.bf16.mxu0 0
  %520 = vmatmul.mubr.bf16.gmra.mrb[0].mxu0 %v317
  %v521 = vpop.f32.mrb[0].mxu0
  %v522 = vadd.f32 %v90, %v521
  %v523 = vpop.f32.mrb[0].mxu0
  %v524 = vpop.f32.mrb[0].mxu0
  %v525 = vadd.f32 %v90, %v524
  %v526 = vpop.f32.mrb[0].mxu0
  %527 = vmatprep.mubr.bf16.mxu0 0
  %528 = vmatmul.mubr.bf16.gmra.mrb[0].mxu0 %v320
  %v529 = vpop.f32.mrb[0].mxu0
  %v530 = vadd.f32 %v90, %v529
  %v531 = vpop.f32.mrb[0].mxu0
  %v532 = vpop.f32.mrb[0].mxu0
  %v533 = vadd.f32 %v90, %v532
  %v534 = vpop.f32.mrb[0].mxu0
  %535 = vmatprep.mubr.bf16.mxu0 0
  %536 = vmatmul.mubr.bf16.gmra.mrb[0].mxu0 %v323
  %v537 = vpop.f32.mrb[0].mxu0
  %v538 = vadd.f32 %v90, %v537
  %v539 = vpop.f32.mrb[0].mxu0
  %v540 = vpop.f32.mrb[0].mxu0
  %v541 = vadd.f32 %v90, %v540
  %v542 = vpop.f32.mrb[0].mxu0
  %543 = vmatprep.mubr.bf16.mxu0 0
  %544 = vmatmul.mubr.bf16.gmra.mrb[0].mxu0 %v326
  %v545 = vpop.f32.mrb[0].mxu0
  %v546 = vadd.f32 %v90, %v545
  %v547 = vpop.f32.mrb[0].mxu0
  %v548 = vpop.f32.mrb[0].mxu0
  %v549 = vadd.f32 %v90, %v548
  %v550 = vpop.f32.mrb[0].mxu0
  %551 = vmatprep.mubr.bf16.mxu0 0
  %552 = vmatmul.mubr.bf16.gmra.mrb[0].mxu0 %v329
  %v553 = vpop.f32.mrb[0].mxu0
  %v554 = vadd.f32 %v90, %v553
  %v555 = vpop.f32.mrb[0].mxu0
  %v556 = vpop.f32.mrb[0].mxu0
  %v557 = vadd.f32 %v90, %v556
  %v558 = vpop.f32.mrb[0].mxu0
  %559 = vmatprep.mubr.bf16.mxu0 0
  %560 = vmatmul.mubr.bf16.gmra.mrb[0].mxu0 %v332
  %v561 = vpop.f32.mrb[0].mxu0
  %v562 = vadd.f32 %v90, %v561
  %v563 = vpop.f32.mrb[0].mxu0
  %v564 = vpop.f32.mrb[0].mxu0
  %v565 = vadd.f32 %v90, %v564
  %v566 = vpop.f32.mrb[0].mxu0
  %567 = vmatprep.mubr.bf16.mxu0 0
  %568 = vmatmul.mubr.bf16.gmra.mrb[0].mxu0 %v335
  %v569 = vpop.f32.mrb[0].mxu0
  %v570 = vadd.f32 %v90, %v569
  %v571 = vpop.f32.mrb[0].mxu0
  %v572 = vpop.f32.mrb[0].mxu0
  %v573 = vadd.f32 %v90, %v572
  %v574 = vpop.f32.mrb[0].mxu0
  %575 = vmatprep.mubr.bf16.mxu0 0
  %576 = vmatmul.mubr.bf16.gmra.mrb[0].mxu0 %v338
  %v577 = vpop.f32.mrb[0].mxu0
  %v578 = vadd.f32 %v90, %v577
  %v579 = vpop.f32.mrb[0].mxu0
  %v580 = vpop.f32.mrb[0].mxu0
  %v581 = vadd.f32 %v90, %v580
  %v582 = vpop.f32.mrb[0].mxu0
  %583 = vmatprep.mubr.bf16.mxu0 0
  %584 = vmatmul.mubr.bf16.gmra.mrb[0].mxu0 %v341
  %v585 = vpop.f32.mrb[0].mxu0
  %v586 = vadd.f32 %v90, %v585
  %v587 = vpop.f32.mrb[0].mxu0
  %v588 = vpop.f32.mrb[0].mxu0
  %v589 = vadd.f32 %v90, %v588
  %v590 = vpop.f32.mrb[0].mxu0
  %591 = vmatprep.mubr.bf16.mxu0 0
  %592 = vmatmul.mubr.bf16.gmra.mrb[0].mxu0 %v344
  %v593 = vpop.f32.mrb[0].mxu0
  %v594 = vadd.f32 %v90, %v593
  %v595 = vpop.f32.mrb[0].mxu0
  %v596 = vpop.f32.mrb[0].mxu0
  %v597 = vadd.f32 %v90, %v596
  %v598 = vpop.f32.mrb[0].mxu0
  %599 = vmatprep.mubr.bf16.mxu0 0
  %600 = vmatmul.mubr.bf16.gmra.mrb[0].mxu0 %v347
  %v601 = vpop.f32.mrb[0].mxu0
  %v602 = vadd.f32 %v90, %v601
  %v603 = vpop.f32.mrb[0].mxu0
  %v604 = vpop.f32.mrb[0].mxu0
  %v605 = vadd.f32 %v90, %v604
  %v606 = vpop.f32.mrb[0].mxu0
  %607 = vmatprep.mubr.bf16.mxu0 0
  %608 = vmatmul.mubr.bf16.gmra.mrb[0].mxu0 %v350
  %v609 = vpop.f32.mrb[0].mxu0
  %v610 = vadd.f32 %v90, %v609
  %v611 = vpop.f32.mrb[0].mxu0
  %v612 = vpop.f32.mrb[0].mxu0
  %v613 = vadd.f32 %v90, %v612
  %v614 = vpop.f32.mrb[0].mxu0
  %615 = vmatprep.mubr.bf16.mxu0 0
  %616 = vmatmul.mubr.bf16.gmra.mrb[0].mxu0 %v353
  %v617 = vpop.f32.mrb[0].mxu0
  %v618 = vadd.f32 %v90, %v617
  %v619 = vpop.f32.mrb[0].mxu0
  %v620 = vpop.f32.mrb[0].mxu0
  %v621 = vadd.f32 %v90, %v620
  %v622 = vpop.f32.mrb[0].mxu0
  %623 = vmatprep.mubr.bf16.mxu0 0
  %624 = vmatmul.mubr.bf16.gmra.mrb[0].mxu0 %v356
  %v625 = vpop.f32.mrb[0].mxu0
  %v626 = vadd.f32 %v90, %v625
  %v627 = vpop.f32.mrb[0].mxu0
  %v628 = vpop.f32.mrb[0].mxu0
  %v629 = vadd.f32 %v90, %v628
  %v630 = vpop.f32.mrb[0].mxu0
  %631 = vmatprep.mubr.bf16.mxu0 0
  %632 = vmatmul.mubr.bf16.gmra.mrb[0].mxu0 %v359
  %v633 = vpop.f32.mrb[0].mxu0
  %v634 = vadd.f32 %v90, %v633
  %v635 = vpop.f32.mrb[0].mxu0
  %v636 = vpop.f32.mrb[0].mxu0
  %v637 = vadd.f32 %v90, %v636
  %v638 = vpop.f32.mrb[0].mxu0
  %639 = vmatprep.mubr.bf16.mxu0 0
  %640 = vmatmul.mubr.bf16.gmra.mrb[0].mxu0 %v362
  %v641 = vpop.f32.mrb[0].mxu0
  %v642 = vadd.f32 %v90, %v641
  %v643 = vpop.f32.mrb[0].mxu0
  %v644 = vpop.f32.mrb[0].mxu0
  %v645 = vadd.f32 %v90, %v644
  %v646 = vpop.f32.mrb[0].mxu0
  %647 = vmatprep.mubr.bf16.mxu0 0
  %648 = vmatmul.mubr.bf16.gmra.mrb[0].mxu0 %v365
  %v649 = vpop.f32.mrb[0].mxu0
  %v650 = vadd.f32 %v90, %v649
  %v651 = vpop.f32.mrb[0].mxu0
  %v652 = vpop.f32.mrb[0].mxu0
  %v653 = vadd.f32 %v90, %v652
  %v654 = vpop.f32.mrb[0].mxu0
  %655 = vdwg.mxu0
  %v656 = vpack.c.bf16 %v405, %v402
  %v657 = vpack.c.bf16 %v413, %v410
  %v658 = vpack.c.bf16 %v421, %v418
  %v659 = vpack.c.bf16 %v429, %v426
  %v660 = vpack.c.bf16 %v437, %v434
  %v661 = vpack.c.bf16 %v445, %v442
  %v662 = vpack.c.bf16 %v453, %v450
  %v663 = vpack.c.bf16 %v461, %v458
  %v664 = vpack.c.bf16 %v469, %v466
  %v665 = vpack.c.bf16 %v477, %v474
  %v666 = vpack.c.bf16 %v485, %v482
  %v667 = vpack.c.bf16 %v493, %v490
  %v668 = vpack.c.bf16 %v501, %v498
  %v669 = vpack.c.bf16 %v509, %v506
  %v670 = vpack.c.bf16 %v517, %v514
  %v671 = vpack.c.bf16 %v525, %v522
  %v672 = vpack.c.bf16 %v533, %v530
  %v673 = vpack.c.bf16 %v541, %v538
  %v674 = vpack.c.bf16 %v549, %v546
  %v675 = vpack.c.bf16 %v557, %v554
  %v676 = vpack.c.bf16 %v565, %v562
  %v677 = vpack.c.bf16 %v573, %v570
  %v678 = vpack.c.bf16 %v581, %v578
  %v679 = vpack.c.bf16 %v589, %v586
  %v680 = vpack.c.bf16 %v597, %v594
  %v681 = vpack.c.bf16 %v605, %v602
  %v682 = vpack.c.bf16 %v613, %v610
  %v683 = vpack.c.bf16 %v621, %v618
  %v684 = vpack.c.bf16 %v629, %v626
  %v685 = vpack.c.bf16 %v637, %v634
  %v686 = vpack.c.bf16 %v645, %v642
  %v687 = vpack.c.bf16 %v653, %v650
  %v720 = vunpack.c.l.b16 %v656
  %v721 = vunpack.c.h.b16 %v656
  %v722 = vunpack.c.l.b16 %v657
  %v723 = vunpack.c.h.b16 %v657
  %v724 = vunpack.c.l.b16 %v658
  %v725 = vunpack.c.h.b16 %v658
  %v726 = vunpack.c.l.b16 %v659
  %v727 = vunpack.c.h.b16 %v659
  %v728 = vunpack.c.l.b16 %v660
  %v729 = vunpack.c.h.b16 %v660
  %v730 = vunpack.c.l.b16 %v661
  %v731 = vunpack.c.h.b16 %v661
  %v732 = vunpack.c.l.b16 %v662
  %v733 = vunpack.c.h.b16 %v662
  %v734 = vunpack.c.l.b16 %v663
  %v735 = vunpack.c.h.b16 %v663
  %v736 = vunpack.c.l.b16 %v664
  %v737 = vunpack.c.h.b16 %v664
  %v738 = vunpack.c.l.b16 %v665
  %v739 = vunpack.c.h.b16 %v665
  %v740 = vunpack.c.l.b16 %v666
  %v741 = vunpack.c.h.b16 %v666
  %v742 = vunpack.c.l.b16 %v667
  %v743 = vunpack.c.h.b16 %v667
  %v744 = vunpack.c.l.b16 %v668
  %v745 = vunpack.c.h.b16 %v668
  %v746 = vunpack.c.l.b16 %v669
  %v747 = vunpack.c.h.b16 %v669
  %v748 = vunpack.c.l.b16 %v670
  %v749 = vunpack.c.h.b16 %v670
  %v750 = vunpack.c.l.b16 %v671
  %v751 = vunpack.c.h.b16 %v671
  %v752 = vunpack.c.l.b16 %v672
  %v753 = vunpack.c.h.b16 %v672
  %v754 = vunpack.c.l.b16 %v673
  %v755 = vunpack.c.h.b16 %v673
  %v756 = vunpack.c.l.b16 %v674
  %v757 = vunpack.c.h.b16 %v674
  %v758 = vunpack.c.l.b16 %v675
  %v759 = vunpack.c.h.b16 %v675
  %v760 = vunpack.c.l.b16 %v676
  %v761 = vunpack.c.h.b16 %v676
  %v762 = vunpack.c.l.b16 %v677
  %v763 = vunpack.c.h.b16 %v677
  %v764 = vunpack.c.l.b16 %v678
  %v765 = vunpack.c.h.b16 %v678
  %v766 = vunpack.c.l.b16 %v679
  %v767 = vunpack.c.h.b16 %v679
  %v768 = vunpack.c.l.b16 %v680
  %v769 = vunpack.c.h.b16 %v680
  %v770 = vunpack.c.l.b16 %v681
  %v771 = vunpack.c.h.b16 %v681
  %v772 = vunpack.c.l.b16 %v682
  %v773 = vunpack.c.h.b16 %v682
  %v774 = vunpack.c.l.b16 %v683
  %v775 = vunpack.c.h.b16 %v683
  %v776 = vunpack.c.l.b16 %v684
  %v777 = vunpack.c.h.b16 %v684
  %v778 = vunpack.c.l.b16 %v685
  %v779 = vunpack.c.h.b16 %v685
  %v780 = vunpack.c.l.b16 %v686
  %v781 = vunpack.c.h.b16 %v686
  %v782 = vunpack.c.l.b16 %v687
  %v783 = vunpack.c.h.b16 %v687
  %v784 = vpack.c.b16 %v720, %v720
  %v785 = vpack.c.b16 %v721, %v721
  %v786 = vpack.c.b16 %v722, %v722
  %v787 = vpack.c.b16 %v723, %v723
  %v788 = vpack.c.b16 %v724, %v724
  %v789 = vpack.c.b16 %v725, %v725
  %v790 = vpack.c.b16 %v726, %v726
  %v791 = vpack.c.b16 %v727, %v727
  %v792 = vpack.c.b16 %v728, %v728
  %v793 = vpack.c.b16 %v729, %v729
  %v794 = vpack.c.b16 %v730, %v730
  %v795 = vpack.c.b16 %v731, %v731
  %v796 = vpack.c.b16 %v732, %v732
  %v797 = vpack.c.b16 %v733, %v733
  %v798 = vpack.c.b16 %v734, %v734
  %v799 = vpack.c.b16 %v735, %v735
  %v800 = vpack.c.b16 %v736, %v736
  %v801 = vpack.c.b16 %v737, %v737
  %v802 = vpack.c.b16 %v738, %v738
  %v803 = vpack.c.b16 %v739, %v739
  %v804 = vpack.c.b16 %v740, %v740
  %v805 = vpack.c.b16 %v741, %v741
  %v806 = vpack.c.b16 %v742, %v742
  %v807 = vpack.c.b16 %v743, %v743
  %v808 = vpack.c.b16 %v744, %v744
  %v809 = vpack.c.b16 %v745, %v745
  %v810 = vpack.c.b16 %v746, %v746
  %v811 = vpack.c.b16 %v747, %v747
  %v812 = vpack.c.b16 %v748, %v748
  %v813 = vpack.c.b16 %v749, %v749
  %v814 = vpack.c.b16 %v750, %v750
  %v815 = vpack.c.b16 %v751, %v751
  %v816 = vpack.c.b16 %v752, %v752
  %v817 = vpack.c.b16 %v753, %v753
  %v818 = vpack.c.b16 %v754, %v754
  %v819 = vpack.c.b16 %v755, %v755
  %v820 = vpack.c.b16 %v756, %v756
  %v821 = vpack.c.b16 %v757, %v757
  %v822 = vpack.c.b16 %v758, %v758
  %v823 = vpack.c.b16 %v759, %v759
  %v824 = vpack.c.b16 %v760, %v760
  %v825 = vpack.c.b16 %v761, %v761
  %v826 = vpack.c.b16 %v762, %v762
  %v827 = vpack.c.b16 %v763, %v763
  %v828 = vpack.c.b16 %v764, %v764
  %v829 = vpack.c.b16 %v765, %v765
  %v830 = vpack.c.b16 %v766, %v766
  %v831 = vpack.c.b16 %v767, %v767
  %v832 = vpack.c.b16 %v768, %v768
  %v833 = vpack.c.b16 %v769, %v769
  %v834 = vpack.c.b16 %v770, %v770
  %v835 = vpack.c.b16 %v771, %v771
  %v836 = vpack.c.b16 %v772, %v772
  %v837 = vpack.c.b16 %v773, %v773
  %v838 = vpack.c.b16 %v774, %v774
  %v839 = vpack.c.b16 %v775, %v775
  %v840 = vpack.c.b16 %v776, %v776
  %v841 = vpack.c.b16 %v777, %v777
  %v842 = vpack.c.b16 %v778, %v778
  %v843 = vpack.c.b16 %v779, %v779
  %v844 = vpack.c.b16 %v780, %v780
  %v845 = vpack.c.b16 %v781, %v781
  %v846 = vpack.c.b16 %v782, %v782
  %v847 = vpack.c.b16 %v783, %v783
  %vm912 = vcmask 257024
  %913 = vst.msk [vmem:[%s3] sm:$0xf] %vm912, %v784
  %914 = vst.msk [vmem:[%s3 + $0x4] sm:$0xf] %vm912, %v785
  %915 = vst.msk [vmem:[%s3 + $0x8] sm:$0xf] %vm912, %v786
  %916 = vst.msk [vmem:[%s3 + $0xc] sm:$0xf] %vm912, %v787
  %917 = vst.msk [vmem:[%s3 + $0x10] sm:$0xf] %vm912, %v788
  %918 = vst.msk [vmem:[%s3 + $0x14] sm:$0xf] %vm912, %v789
  %919 = vst.msk [vmem:[%s3 + $0x18] sm:$0xf] %vm912, %v790
  %920 = vst.msk [vmem:[%s3 + $0x1c] sm:$0xf] %vm912, %v791
  %921 = vst.msk [vmem:[%s3 + $0x20] sm:$0xf] %vm912, %v792
  %922 = vst.msk [vmem:[%s3 + $0x24] sm:$0xf] %vm912, %v793
  %923 = vst.msk [vmem:[%s3 + $0x28] sm:$0xf] %vm912, %v794
  %924 = vst.msk [vmem:[%s3 + $0x2c] sm:$0xf] %vm912, %v795
  %925 = vst.msk [vmem:[%s3 + $0x30] sm:$0xf] %vm912, %v796
  %926 = vst.msk [vmem:[%s3 + $0x34] sm:$0xf] %vm912, %v797
  %927 = vst.msk [vmem:[%s3 + $0x38] sm:$0xf] %vm912, %v798
  %928 = vst.msk [vmem:[%s3 + $0x3c] sm:$0xf] %vm912, %v799
  %929 = vst.msk [vmem:[%s3 + $0x40] sm:$0xf] %vm912, %v800
  %930 = vst.msk [vmem:[%s3 + $0x44] sm:$0xf] %vm912, %v801
  %931 = vst.msk [vmem:[%s3 + $0x48] sm:$0xf] %vm912, %v802
  %932 = vst.msk [vmem:[%s3 + $0x4c] sm:$0xf] %vm912, %v803
  %933 = vst.msk [vmem:[%s3 + $0x50] sm:$0xf] %vm912, %v804
  %934 = vst.msk [vmem:[%s3 + $0x54] sm:$0xf] %vm912, %v805
  %935 = vst.msk [vmem:[%s3 + $0x58] sm:$0xf] %vm912, %v806
  %936 = vst.msk [vmem:[%s3 + $0x5c] sm:$0xf] %vm912, %v807
  %937 = vst.msk [vmem:[%s3 + $0x60] sm:$0xf] %vm912, %v808
  %938 = vst.msk [vmem:[%s3 + $0x64] sm:$0xf] %vm912, %v809
  %939 = vst.msk [vmem:[%s3 + $0x68] sm:$0xf] %vm912, %v810
  %940 = vst.msk [vmem:[%s3 + $0x6c] sm:$0xf] %vm912, %v811
  %941 = vst.msk [vmem:[%s3 + $0x70] sm:$0xf] %vm912, %v812
  %942 = vst.msk [vmem:[%s3 + $0x74] sm:$0xf] %vm912, %v813
  %943 = vst.msk [vmem:[%s3 + $0x78] sm:$0xf] %vm912, %v814
  %944 = vst.msk [vmem:[%s3 + $0x7c] sm:$0xf] %vm912, %v815
  %945 = vst.msk [vmem:[%s3 + $0x80] sm:$0xf] %vm912, %v816
  %946 = vst.msk [vmem:[%s3 + $0x84] sm:$0xf] %vm912, %v817
  %947 = vst.msk [vmem:[%s3 + $0x88] sm:$0xf] %vm912, %v818
  %948 = vst.msk [vmem:[%s3 + $0x8c] sm:$0xf] %vm912, %v819
  %949 = vst.msk [vmem:[%s3 + $0x90] sm:$0xf] %vm912, %v820
  %950 = vst.msk [vmem:[%s3 + $0x94] sm:$0xf] %vm912, %v821
  %951 = vst.msk [vmem:[%s3 + $0x98] sm:$0xf] %vm912, %v822
  %952 = vst.msk [vmem:[%s3 + $0x9c] sm:$0xf] %vm912, %v823
  %953 = vst.msk [vmem:[%s3 + $0xa0] sm:$0xf] %vm912, %v824
  %954 = vst.msk [vmem:[%s3 + $0xa4] sm:$0xf] %vm912, %v825
  %955 = vst.msk [vmem:[%s3 + $0xa8] sm:$0xf] %vm912, %v826
  %956 = vst.msk [vmem:[%s3 + $0xac] sm:$0xf] %vm912, %v827
  %957 = vst.msk [vmem:[%s3 + $0xb0] sm:$0xf] %vm912, %v828
  %958 = vst.msk [vmem:[%s3 + $0xb4] sm:$0xf] %vm912, %v829
  %959 = vst.msk [vmem:[%s3 + $0xb8] sm:$0xf] %vm912, %v830
  %960 = vst.msk [vmem:[%s3 + $0xbc] sm:$0xf] %vm912, %v831
  %961 = vst.msk [vmem:[%s3 + $0xc0] sm:$0xf] %vm912, %v832
  %962 = vst.msk [vmem:[%s3 + $0xc4] sm:$0xf] %vm912, %v833
  %963 = vst.msk [vmem:[%s3 + $0xc8] sm:$0xf] %vm912, %v834
  %964 = vst.msk [vmem:[%s3 + $0xcc] sm:$0xf] %vm912, %v835
  %965 = vst.msk [vmem:[%s3 + $0xd0] sm:$0xf] %vm912, %v836
  %966 = vst.msk [vmem:[%s3 + $0xd4] sm:$0xf] %vm912, %v837
  %967 = vst.msk [vmem:[%s3 + $0xd8] sm:$0xf] %vm912, %v838
  %968 = vst.msk [vmem:[%s3 + $0xdc] sm:$0xf] %vm912, %v839
  %969 = vst.msk [vmem:[%s3 + $0xe0] sm:$0xf] %vm912, %v840
  %970 = vst.msk [vmem:[%s3 + $0xe4] sm:$0xf] %vm912, %v841
  %971 = vst.msk [vmem:[%s3 + $0xe8] sm:$0xf] %vm912, %v842
  %972 = vst.msk [vmem:[%s3 + $0xec] sm:$0xf] %vm912, %v843
  %973 = vst.msk [vmem:[%s3 + $0xf0] sm:$0xf] %vm912, %v844
  %974 = vst.msk [vmem:[%s3 + $0xf4] sm:$0xf] %vm912, %v845
  %975 = vst.msk [vmem:[%s3 + $0xf8] sm:$0xf] %vm912, %v846
  %976 = vst.msk [vmem:[%s3 + $0xfc] sm:$0xf] %vm912, %v847
  // Predicated region
  $region14: #{tpu_custom_call.1} parent=0 // pred_check
    _
  $region15: #{tpu_custom_call.1} parent=0 // pred_check_branch
    %978 = sbr.rel (0) target = $region17
  $region16: #{tpu_custom_call.1} parent=0 // pred_region
    _
  $region17: #{tpu_custom_call.1} parent=0 // pred_fallthru
    _
  // Predicated region
  $region18: #{tpu_custom_call.1} parent=0 // pred_check
    _
  $region19: #{tpu_custom_call.1} parent=0 // pred_check_branch
    %980 = sbr.rel (0) target = $region21
  $region20: #{tpu_custom_call.1} parent=0 // pred_region
    _
  $region21: #{tpu_custom_call.1} parent=0 // pred_fallthru
    _

</llo_original>
